<compile_context>
chip_gen: v7x
topology: tpu7x:2x2x1
jax: 0.10.0
libtpu: 0.0.40
codegen_flags: <defaults>
</compile_context>

<pallas_src>
import functools

import jax
import jax.numpy as jnp
from jax.experimental import pallas as pl
from jax.experimental.pallas import tpu as pltpu

_LANE = 128
_SUBLANE = 8
_MAX_TILE_ROWS = 2048


# ------------------------------------------------------------------ kernels ---

def _cox_packed_kernel(x_ref, w_ref, o_ref):
    """Lane-dense path.  x_ref: (tile, 128) holds R = 128//D samples per row,
    w_ref: (128, R) = kron(I_R, beta), o_ref: (tile, R) per-sample scores."""
    o_ref[...] = jnp.dot(
        x_ref[...], w_ref[...], preferred_element_type=jnp.float32
    ).astype(o_ref.dtype)


def _cox_rowsum_kernel(x_ref, w_ref, o_ref):
    """Generic path.  x_ref: (tile, D); w_ref: (1, D); o_ref: (tile, 1).
    VPU multiply + lane reduce; f32 accumulation (v5e-safe for bf16 inputs)."""
    x = x_ref[...].astype(jnp.float32)
    w = w_ref[...].astype(jnp.float32)
    o_ref[...] = jnp.sum(x * w, axis=-1, keepdims=True).astype(o_ref.dtype)


# ---------------------------------------------------------------- tiling -------

def _round_up(v, m):
    return (v + m - 1) // m * m


def _vmem_capacity_bytes():
    try:
        return int(pltpu.get_tpu_info().vmem_capacity_bytes)
    except Exception:
        return 64 * 1024 * 1024  # conservative: v7x per-TensorCore VMEM


def _pick_tile_rows(n_rows, row_bytes):
    """Largest multiple-of-8 row tile whose double-buffered x block fits the VMEM
    budget, guaranteeing >=2 grid steps when there is enough work (v7x megacore)."""
    budget = min(_vmem_capacity_bytes() // 4, 32 * 1024 * 1024)
    per_buffer = max(budget // 3, row_bytes * _SUBLANE)  # 2 x-buffers + out/w slack
    fit = max(_SUBLANE, (per_buffer // row_bytes) // _SUBLANE * _SUBLANE)
    tile = min(fit, _MAX_TILE_ROWS, _round_up(n_rows, _SUBLANE))
    if n_rows > 2 * _SUBLANE and pl.cdiv(n_rows, tile) < 2:
        tile = max(_SUBLANE, _round_up(pl.cdiv(n_rows, 2), _SUBLANE))
    return tile


def _pallas_matvec(x2d, w2d, kernel, out_cols):
    """Shared pallas_call driver: 1-D 'parallel' grid over rows, full-width blocks."""
    n_rows, n_cols = x2d.shape
    itemsize = jnp.dtype(x2d.dtype).itemsize
    row_bytes = _round_up(n_cols, _LANE) * itemsize  # lane-padded VMEM row
    tile = _pick_tile_rows(n_rows, row_bytes)
    grid = (pl.cdiv(n_rows, tile),)

    needed = 2 * (tile * row_bytes + tile * _LANE * 4) + _LANE * _LANE * 4
    vmem_limit = int(min(_vmem_capacity_bytes() // 2,
                         max(2 * needed, 32 * 1024 * 1024)))

    cost = pl.CostEstimate(
        flops=2 * n_rows * n_cols,
        transcendentals=0,
        bytes_accessed=(x2d.size * itemsize
                        + w2d.size * jnp.dtype(w2d.dtype).itemsize
                        + n_rows * out_cols * 4),
    )

    return pl.pallas_call(
        kernel,
        out_shape=jax.ShapeDtypeStruct((n_rows, out_cols), jnp.float32),
        grid_spec=pltpu.PrefetchScalarGridSpec(
            num_scalar_prefetch=0,
            grid=grid,
            in_specs=[
                pl.BlockSpec((tile, n_cols), lambda i: (i, 0)),  # batch tile of x
                pl.BlockSpec(w2d.shape, lambda i: (0, 0)),       # beta (shared)
            ],
            out_specs=pl.BlockSpec((tile, out_cols), lambda i: (i, 0)),
        ),
        compiler_params=pltpu.CompilerParams(
            dimension_semantics=("parallel",),
            vmem_limit_bytes=vmem_limit,
        ),
        cost_estimate=cost,
    )(x2d, w2d)


# ---------------------------------------------------------------- forward ------

def cox_forward(x, weight, *, compute_dtype=None, min_pallas_elems=1 << 17,
                force_pallas=False):
    """beta^T * X for every row of x (exponentiate to get hazard ratios).

    Args:
      x:       (B, D) covariate matrix.
      weight:  PyTorch-style Linear weight, shape (1, D), or its transpose (D, 1).
      compute_dtype: optional narrower streaming dtype (e.g. jnp.bfloat16) to halve
        HBM traffic; accumulation stays f32.
      min_pallas_elems: below this many x elements, fall back to plain XLA.
      force_pallas: always take the Pallas path (used by the self-test).

    Returns:
      (B, 1) float32 log-hazard ratios.
    """
    B, D = x.shape
    w_col = weight.reshape(D, 1) if weight.shape == (1, D) else weight
    assert w_col.shape == (D, 1), f"bad weight shape {weight.shape}"

    if compute_dtype is not None:
        x = x.astype(compute_dtype)
        w_col = w_col.astype(compute_dtype)

    # Tiny problems: fixed pallas_call / grid-step overhead dwarfs 2*B*D flops.
    if not force_pallas and B * D < min_pallas_elems:
        return x.astype(jnp.float32) @ w_col.astype(jnp.float32)

    # Lane-dense path: pack R = 128 // D samples per vreg row (free row-major
    # reshape) and fold beta into a block-diagonal (128, R) matrix so one tiny
    # matmul performs the per-sample segmented reduce with all 128 lanes used.
    if D <= _LANE and _LANE % D == 0 and B % (_LANE // D) == 0:
        r = _LANE // D
        x_packed = x.reshape(B // r, r * D)
        w_block = jnp.kron(jnp.eye(r, dtype=w_col.dtype), w_col)  # (128, R)
        out = _pallas_matvec(x_packed, w_block, _cox_packed_kernel, out_cols=r)
        return out.reshape(B, 1)

    # Generic path: full-D blocks, VPU multiply + row reduce.
    # TODO(synk): add a K ("arbitrary") grid axis with an f32 VMEM accumulator for
    # very large D so per-buffer VMEM stays bounded on v7x (64 MiB).
    w_row = w_col.reshape(1, D)
    return _pallas_matvec(x, w_row, _cox_rowsum_kernel, out_cols=1)


# ------------------------------------------------------------------- demo ------

if __name__ == "__main__":
    key = jax.random.PRNGKey(0)
    kx1, kx2, kw1, kw2 = jax.random.split(key, 4)

    def make_weight(k, d):
        # torch.nn.Linear default init: U(-1/sqrt(D), 1/sqrt(D)), weight shape (1, D)
        bound = 1.0 / jnp.sqrt(jnp.float32(d))
        return jax.random.uniform(k, (1, d), jnp.float32, -bound, bound)

    # 1) Tiny problem (the module's toy regime): auto-dispatch uses the fused XLA path.
    B0, D0 = 8, 32
    W0 = make_weight(kw1, D0)
    x0 = jax.random.normal(kx1, (B0, D0), jnp.float32)
    y0 = jax.block_until_ready(cox_forward(x0, W0))
    assert y0.shape == (B0, 1)
    assert jnp.allclose(y0, x0 @ W0.T, atol=1e-5, rtol=1e-5), "tiny-path mismatch"

    fwd = jax.jit(functools.partial(cox_forward, force_pallas=True))

    # 2) Lane-dense Pallas path (D | 128), forced through the kernel.
    B1, D1 = 1024, 32
    W1 = make_weight(kw1, D1)
    x1 = jax.random.normal(kx1, (B1, D1), jnp.float32)
    y1 = jax.block_until_ready(fwd(x1, W1))
    assert y1.shape == (B1, 1)
    assert jnp.allclose(y1, x1 @ W1.T, atol=1e-4, rtol=1e-4), "packed-path mismatch"

    # 3) Generic VPU-reduce Pallas path (D does not divide 128).
    B2, D2 = 512, 48
    W2 = make_weight(kw2, D2)
    x2 = jax.random.normal(kx2, (B2, D2), jnp.float32)
    y2 = jax.block_until_ready(fwd(x2, W2))
    assert y2.shape == (B2, 1)
    assert jnp.allclose(y2, x2 @ W2.T, atol=1e-4, rtol=1e-4), "generic-path mismatch"

    print("KERNEL_OK")
</pallas_src>

<mosaic_0001>
module attributes {stable_mosaic.version = 11 : i64} {
  func.func @_cox_packed_kernel(%arg0: i32, %arg1: memref<128x128xf32, #tpu.memory_space<vmem>>, %arg2: memref<128x4xf32, #tpu.memory_space<vmem>>, %arg3: memref<128x4xf32, #tpu.memory_space<vmem>>) attributes {dimension_semantics = [#tpu.dimension_semantics<parallel>], iteration_bounds = array<i64: 2>, scalar_prefetch = 0 : i64, scratch_operands = 0 : i64, tpu.core_type = #tpu.core_type<tc>, window_params = [{transform_indices = @transform_0, window_bounds = array<i64: 128, 128>}, {pipeline_mode = #tpu.pipeline_mode<synchronous>, transform_indices = @transform_1, window_bounds = array<i64: 128, 4>}, {transform_indices = @transform_2, window_bounds = array<i64: 128, 4>}]} {
    %c0 = arith.constant 0 : index
    %c0_0 = arith.constant 0 : index
    %0 = vector.load %arg1[%c0, %c0_0] : memref<128x128xf32, #tpu.memory_space<vmem>>, vector<128x128xf32>
    %c0_1 = arith.constant 0 : index
    %c0_2 = arith.constant 0 : index
    %1 = vector.load %arg2[%c0_1, %c0_2] : memref<128x4xf32, #tpu.memory_space<vmem>>, vector<128x4xf32>
    %cst = arith.constant dense<0.000000e+00> : vector<128x4xf32>
    %2 = tpu.matmul %0, %1, %cst {dimension_numbers = #tpu.dot_dimension_numbers<[1], [0], [0], [1], [0, 0, 1, 1], [], []>} : vector<128x128xf32>, vector<128x4xf32>, vector<128x4xf32> -> vector<128x4xf32>
    %c0_3 = arith.constant 0 : index
    %c0_4 = arith.constant 0 : index
    %3 = vector.load %arg3[%c0_3, %c0_4] : memref<128x4xf32, #tpu.memory_space<vmem>>, vector<128x4xf32>
    tpu.vector_store %arg3[%c0_3, %c0_4], %2 {strides = array<i32>} : memref<128x4xf32, #tpu.memory_space<vmem>>, vector<128x4xf32>,
    return
  }
  func.func @transform_0(%arg0: i32) -> (i32, i32) {
    %c0_i32 = arith.constant 0 : i32
    %c0_i32_0 = arith.constant 0 : i32
    return %arg0, %c0_i32 : i32, i32
  }
  func.func @transform_1(%arg0: i32) -> (i32, i32) {
    %c0_i32 = arith.constant 0 : i32
    %c0_i32_0 = arith.constant 0 : i32
    %c0_i32_1 = arith.constant 0 : i32
    return %c0_i32, %c0_i32_0 : i32, i32
  }
  func.func @transform_2(%arg0: i32) -> (i32, i32) {
    %c0_i32 = arith.constant 0 : i32
    %c0_i32_0 = arith.constant 0 : i32
    return %arg0, %c0_i32 : i32, i32
  }
}

</mosaic_0001>

<llo_original>
// kernel: cox_forward.1
$region0: #{cox_forward.1}
  #allocation0 [shape = 'u32[]', space=smem, size = 0x4, offset = 0x4, fixed_abs, tag = 'smem constant byte address 0x4 - core index']
  #allocation1 [shape = 'u32[144,128]{1,0:T(1,128)}', space=vmem, size = 0x12000, scoped, tag = 'internal scratch']
  %s0 = inlined_call_operand.vmem [shape: f32[256,128], index: 0, kind: input, shape index: {}]
  %s1 = inlined_call_operand.vmem [shape: f32[128,4], index: 1, kind: input, shape index: {}]
  %s2 = inlined_call_operand.vmem [shape: f32[256,4], index: 2, kind: output, shape index: {}]
  %s3 = sld [smem:[#allocation0]]
  $region41: #{cox_forward.1} parent=0
    _
  %s5 = ssub.s32 1, %s3
  %s6 = scalar_select 0, %s5, %s3
  loop: start=0, step=1, limit=4
  $region2: #{cox_forward.1} parent=0 // loop_pre_header
    _
  $region3: #{cox_forward.1} parent=0 // loop_header
    %s8 = sphi 0, %s12
    %p9 = scmp.ge.s32.totalorder %s8, 4
    %s18 = sphi 0, %s20
    %s21 = sphi 0, %s18
    %s22 = sphi 0, %s21
    %s38 = sphi 0, %s22
    %s42 = sphi 0, %s42
    %s44 = sphi 0, %s42
    %s45 = sphi 0, %s44
    %s59 = sphi 0, %s45
    %s65 = sphi 0, %s67
    %s68 = sphi 0, %s65
    %s69 = sphi 0, %s68
    %s85 = sphi 0, %s69
  $region4: #{cox_forward.1} parent=0 // loop_header_branch
    %11 = sbr.rel (%p9) target = $region8
  $region5: #{cox_forward.1} parent=0 // loop_body
    %s13 = ssub.s32 %s8, 1
    %s14 = ssub.s32 %s8, 2
    %s15 = sadd.s32 %s8, 1
    %s16 = ssub.s32 %s8, %s15
    %p17 = scmp.eq.s32.totalorder %s16, 0
    %s19 = sadd.s32 %s18, 1
    %s20 = scalar_select %p17, %s18, %s19
    %p23 = pneg %p17
    %p24 = scmp.eq.s32.totalorder %s8, 1
    %p25 = por %p23, %p24
    %p26 = scmp.ne.s32.totalorder %s18, %s21
    %p27 = scmp.eq.s32.totalorder %s8, 0
    %p28 = por %p26, %p27
    %p29 = scmp.ne.s32.totalorder %s18, %s21
    %p30 = scmp.eq.s32.totalorder %s13, 1
    %p31 = por %p29, %p30
    %p32 = scmp.ne.s32.totalorder %s21, %s22
    %p33 = scmp.eq.s32.totalorder %s13, 0
    %p34 = por %p32, %p33
    %p35 = scmp.ne.s32.totalorder %s21, %s22
    %p36 = scmp.eq.s32.totalorder %s14, 1
    %p37 = por %p35, %p36
    %p39 = scmp.ne.s32.totalorder %s22, %s38
    %p40 = scmp.eq.s32.totalorder %s14, 0
    %p41 = por %p39, %p40
    %s43 = sadd.s32 %s42, 1
    %p46 = scmp.eq.s32.totalorder %s8, 1
    %p47 = scmp.ne.s32.totalorder %s42, %s44
    %p48 = scmp.eq.s32.totalorder %s8, 0
    %p49 = por %p47, %p48
    %p50 = scmp.ne.s32.totalorder %s42, %s44
    %p51 = scmp.eq.s32.totalorder %s13, 1
    %p52 = por %p50, %p51
    %p53 = scmp.ne.s32.totalorder %s44, %s45
    %p54 = scmp.eq.s32.totalorder %s13, 0
    %p55 = por %p53, %p54
    %p56 = scmp.ne.s32.totalorder %s44, %s45
    %p57 = scmp.eq.s32.totalorder %s14, 1
    %p58 = por %p56, %p57
    %p60 = scmp.ne.s32.totalorder %s45, %s59
    %p61 = scmp.eq.s32.totalorder %s14, 0
    %p62 = por %p60, %p61
    %s63 = ssub.s32 %s8, %s15
    %p64 = scmp.eq.s32.totalorder %s63, 0
    %s66 = sadd.s32 %s65, 1
    %s67 = scalar_select %p64, %s65, %s66
    %p70 = pneg %p64
    %p71 = scmp.eq.s32.totalorder %s8, 1
    %p72 = por %p70, %p71
    %p73 = scmp.ne.s32.totalorder %s65, %s68
    %p74 = scmp.eq.s32.totalorder %s8, 0
    %p75 = por %p73, %p74
    %p76 = scmp.ne.s32.totalorder %s65, %s68
    %p77 = scmp.eq.s32.totalorder %s13, 1
    %p78 = por %p76, %p77
    %p79 = scmp.ne.s32.totalorder %s68, %s69
    %p80 = scmp.eq.s32.totalorder %s13, 0
    %p81 = por %p79, %p80
    %p82 = scmp.ne.s32.totalorder %s68, %s69
    %p83 = scmp.eq.s32.totalorder %s14, 1
    %p84 = por %p82, %p83
    %p86 = scmp.ne.s32.totalorder %s69, %s85
    %p87 = scmp.eq.s32.totalorder %s14, 0
    %p88 = por %p86, %p87
    %p89 = scmp.le.s32.totalorder 1, %s8
    %p90 = scmp.lt.s32.totalorder %s8, 3
    %p91 = pnand %p89, %p90
    %p92 = pneg %p91
    // Predicated region
    $region9: #{cox_forward.1} parent=5 // pred_check
      _
    $region10: #{cox_forward.1} parent=5 // pred_check_branch
      %94 = sbr.rel (%p91) target = $region12
    $region11: #{cox_forward.1} parent=5 // pred_region
      %s95 = ssub.s32 %s8, 1
      // Predicated region
      $region13: #{cox_forward.1} parent=11 // pred_check
        %p96 = pneg %p55
      $region14: #{cox_forward.1} parent=11 // pred_check_branch
        %98 = sbr.rel (%p96) target = $region16
      $region15: #{cox_forward.1} parent=11 // pred_region
        _
      $region16: #{cox_forward.1} parent=11 // pred_fallthru
        _
    $region12: #{cox_forward.1} parent=5 // pred_fallthru
      _
    %p99 = scmp.lt.s32.totalorder %s8, 2
    // Predicated region
    $region17: #{cox_forward.1} parent=5 // pred_check
      %p100 = pneg %p99
    $region18: #{cox_forward.1} parent=5 // pred_check_branch
      %102 = sbr.rel (%p100) target = $region20
    $region19: #{cox_forward.1} parent=5 // pred_region
      // Predicated region
      $region21: #{cox_forward.1} parent=19 // pred_check
        %p103 = pneg %p28
      $region22: #{cox_forward.1} parent=19 // pred_check_branch
        %105 = sbr.rel (%p103) target = $region24
      $region23: #{cox_forward.1} parent=19 // pred_region
        %s106 = smul.u32 16, %s8
        %p107 = scmp.lt.s32.totalorder %s106, 31
        %s108 = scalar_select %p107, %s106, 31
        %s109 = smul.addr %s108, 8
        %s110 = scalar_lea.vmem %s0, %s109
        %s111 = smul.u32 16, %s8
      $region24: #{cox_forward.1} parent=19 // pred_fallthru
        _
    $region20: #{cox_forward.1} parent=5 // pred_fallthru
      _
    %p112 = scmp.le.s32.totalorder 1, %s8
    %p113 = scmp.lt.s32.totalorder %s8, 3
    %p114 = pnand %p112, %p113
    %p115 = pneg %p114
    // Predicated region
    $region25: #{cox_forward.1} parent=5 // pred_check
      _
    $region26: #{cox_forward.1} parent=5 // pred_check_branch
      %117 = sbr.rel (%p114) target = $region28
    $region27: #{cox_forward.1} parent=5 // pred_region
      %s118 = ssub.s32 %s8, 1
      %s119 = smul.u32 16, %s13
      %p120 = scmp.lt.s32.totalorder %s119, 31
      %s121 = scalar_select %p120, %s119, 31
      %s122 = smul.addr %s121, 8
      %s123 = scalar_lea.vmem %s0, %s122
      %p124 = pneg %p34
      %p125 = pneg %p31
      %p126 = pneg %p55
      %p127 = pneg %p52
      %p128 = pneg %p81
      %p129 = pneg %p78
      %s130 = smul.u32 16, %s13
      %p131 = scmp.lt.s32.totalorder %s130, 31
      %s132 = scalar_select %p131, %s130, 31
      %s133 = smul.addr %s132, 8
      %s134 = scalar_lea.vmem %s2, %s133
      %s135 = smul.u32 16, %s13
      %p136 = scmp.lt.s32.totalorder %s135, 31
      %s137 = scalar_select %p136, %s135, 31
      %s138 = smul.addr %s137, 8
      %s139 = scalar_lea.vmem %s0, %s138
      %s140 = smul.u32 16, %s13
      %s141 = smul.u32 16, %s13
      %p142 = scmp.lt.s32.totalorder %s141, 31
      %s143 = scalar_select %p142, %s141, 31
      %s144 = smul.addr %s143, 8
      %s145 = scalar_lea.vmem %s2, %s144
      %s146 = smul.u32 16, %s13
      %v147 = vld [vmem:[%s139] sm:$0xff]
      %v148 = vld [vmem:[%s139 + $0x8] sm:$0xff]
      %v149 = vld [vmem:[%s139 + $0x10] sm:$0xff]
      %v150 = vld [vmem:[%s139 + $0x18] sm:$0xff]
      %v151 = vld [vmem:[%s139 + $0x20] sm:$0xff]
      %v152 = vld [vmem:[%s139 + $0x28] sm:$0xff]
      %v153 = vld [vmem:[%s139 + $0x30] sm:$0xff]
      %v154 = vld [vmem:[%s139 + $0x38] sm:$0xff]
      %v155 = vld [vmem:[%s139 + $0x40] sm:$0xff]
      %v156 = vld [vmem:[%s139 + $0x48] sm:$0xff]
      %v157 = vld [vmem:[%s139 + $0x50] sm:$0xff]
      %v158 = vld [vmem:[%s139 + $0x58] sm:$0xff]
      %v159 = vld [vmem:[%s139 + $0x60] sm:$0xff]
      %v160 = vld [vmem:[%s139 + $0x68] sm:$0xff]
      %v161 = vld [vmem:[%s139 + $0x70] sm:$0xff]
      %v162 = vld [vmem:[%s139 + $0x78] sm:$0xff]
      %v163 = vld [vmem:[%s1] sm:$0xff]
      %v164 = vld [vmem:[%s1 + $0x8] sm:$0xff]
      %v165 = vld [vmem:[%s1 + $0x10] sm:$0xff]
      %v166 = vld [vmem:[%s1 + $0x18] sm:$0xff]
      %v167 = vld [vmem:[%s1 + $0x20] sm:$0xff]
      %v168 = vld [vmem:[%s1 + $0x28] sm:$0xff]
      %v169 = vld [vmem:[%s1 + $0x30] sm:$0xff]
      %v170 = vld [vmem:[%s1 + $0x38] sm:$0xff]
      %v171 = vld [vmem:[%s1 + $0x40] sm:$0xff]
      %v172 = vld [vmem:[%s1 + $0x48] sm:$0xff]
      %v173 = vld [vmem:[%s1 + $0x50] sm:$0xff]
      %v174 = vld [vmem:[%s1 + $0x58] sm:$0xff]
      %v175 = vld [vmem:[%s1 + $0x60] sm:$0xff]
      %v176 = vld [vmem:[%s1 + $0x68] sm:$0xff]
      %v177 = vld [vmem:[%s1 + $0x70] sm:$0xff]
      %v178 = vld [vmem:[%s1 + $0x78] sm:$0xff]
      %179 = vmatprep.subr.mxu0 0.0
      %180 = vmatpush1.msra.mxu0 %v163
      %181 = vmatprep.subr.mxu0 0.0
      %182 = vmatpush1.msra.mxu0 %v164
      %183 = vmatprep.subr.mxu0 0.0
      %184 = vmatpush1.msra.mxu0 %v165
      %185 = vmatprep.subr.mxu0 0.0
      %186 = vmatpush1.msra.mxu0 %v166
      %187 = vmatprep.subr.mxu0 0.0
      %188 = vmatpush1.msra.mxu0 %v167
      %189 = vmatprep.subr.mxu0 0.0
      %190 = vmatpush1.msra.mxu0 %v168
      %191 = vmatprep.subr.mxu0 0.0
      %192 = vmatpush1.msra.mxu0 %v169
      %193 = vmatprep.subr.mxu0 0.0
      %194 = vmatpush1.msra.mxu0 %v170
      %195 = vmatprep.subr.mxu0 0.0
      %196 = vmatpush1.msra.mxu0 %v171
      %197 = vmatprep.subr.mxu0 0.0
      %198 = vmatpush1.msra.mxu0 %v172
      %199 = vmatprep.subr.mxu0 0.0
      %200 = vmatpush1.msra.mxu0 %v173
      %201 = vmatprep.subr.mxu0 0.0
      %202 = vmatpush1.msra.mxu0 %v174
      %203 = vmatprep.subr.mxu0 0.0
      %204 = vmatpush1.msra.mxu0 %v175
      %205 = vmatprep.subr.mxu0 0.0
      %206 = vmatpush1.msra.mxu0 %v176
      %207 = vmatprep.subr.mxu0 0.0
      %208 = vmatpush1.msra.mxu0 %v177
      %209 = vmatprep.subr.mxu0 0.0
      %210 = vmatpush1.msra.mxu0 %v178
      %211 = vmatprep.subr.mxu0 0.0
      %212 = vmatpush1.msra.mxu0 0.0
      %213 = vmatprep.subr.mxu0 0.0
      %214 = vmatpush1.msra.mxu0 0.0
      %215 = vmatprep.subr.mxu0 0.0
      %216 = vmatpush1.msra.mxu0 0.0
      %217 = vmatprep.subr.mxu0 0.0
      %218 = vmatpush1.msra.mxu0 0.0
      %219 = vmatprep.subr.mxu0 0.0
      %220 = vmatpush1.msra.mxu0 0.0
      %221 = vmatprep.subr.mxu0 0.0
      %222 = vmatpush1.msra.mxu0 0.0
      %223 = vmatprep.subr.mxu0 0.0
      %224 = vmatpush1.msra.mxu0 0.0
      %225 = vmatprep.subr.mxu0 0.0
      %226 = vmatpush1.msra.mxu0 0.0
      %227 = vmatprep.subr.mxu0 0.0
      %228 = vmatpush1.msra.mxu0 0.0
      %229 = vmatprep.subr.mxu0 0.0
      %230 = vmatpush1.msra.mxu0 0.0
      %231 = vmatprep.subr.mxu0 0.0
      %232 = vmatpush1.msra.mxu0 0.0
      %233 = vmatprep.subr.mxu0 0.0
      %234 = vmatpush1.msra.mxu0 0.0
      %235 = vmatprep.subr.mxu0 0.0
      %236 = vmatpush1.msra.mxu0 0.0
      %237 = vmatprep.subr.mxu0 0.0
      %238 = vmatpush1.msra.mxu0 0.0
      %239 = vmatprep.subr.mxu0 0.0
      %240 = vmatpush1.msra.mxu0 0.0
      %241 = vmatprep.subr.mxu0 0.0
      %242 = vmatpush1.msra.mxu0 0.0
      %243 = vmatprep.mubr.f32.mxu0 0.0
      %244 = vmatmul.mubr.f32.gmra.mrb[0].mxu0 %v147
      %v245 = vpop.f32.mrb[0].mxu0
      %v246 = vadd.f32 0.0, %v245
      %v247 = vpop.f32.mrb[0].mxu0
      %248 = vmatprep.mubr.f32.mxu0 0.0
      %249 = vmatmul.mubr.f32.gmra.mrb[0].mxu0 %v148
      %v250 = vpop.f32.mrb[0].mxu0
      %v251 = vadd.f32 0.0, %v250
      %v252 = vpop.f32.mrb[0].mxu0
      %253 = vmatprep.mubr.f32.mxu0 0.0
      %254 = vmatmul.mubr.f32.gmra.mrb[0].mxu0 %v149
      %v255 = vpop.f32.mrb[0].mxu0
      %v256 = vadd.f32 0.0, %v255
      %v257 = vpop.f32.mrb[0].mxu0
      %258 = vmatprep.mubr.f32.mxu0 0.0
      %259 = vmatmul.mubr.f32.gmra.mrb[0].mxu0 %v150
      %v260 = vpop.f32.mrb[0].mxu0
      %v261 = vadd.f32 0.0, %v260
      %v262 = vpop.f32.mrb[0].mxu0
      %263 = vmatprep.mubr.f32.mxu0 0.0
      %264 = vmatmul.mubr.f32.gmra.mrb[0].mxu0 %v151
      %v265 = vpop.f32.mrb[0].mxu0
      %v266 = vadd.f32 0.0, %v265
      %v267 = vpop.f32.mrb[0].mxu0
      %268 = vmatprep.mubr.f32.mxu0 0.0
      %269 = vmatmul.mubr.f32.gmra.mrb[0].mxu0 %v152
      %v270 = vpop.f32.mrb[0].mxu0
      %v271 = vadd.f32 0.0, %v270
      %v272 = vpop.f32.mrb[0].mxu0
      %273 = vmatprep.mubr.f32.mxu0 0.0
      %274 = vmatmul.mubr.f32.gmra.mrb[0].mxu0 %v153
      %v275 = vpop.f32.mrb[0].mxu0
      %v276 = vadd.f32 0.0, %v275
      %v277 = vpop.f32.mrb[0].mxu0
      %278 = vmatprep.mubr.f32.mxu0 0.0
      %279 = vmatmul.mubr.f32.gmra.mrb[0].mxu0 %v154
      %v280 = vpop.f32.mrb[0].mxu0
      %v281 = vadd.f32 0.0, %v280
      %v282 = vpop.f32.mrb[0].mxu0
      %283 = vmatprep.mubr.f32.mxu0 0.0
      %284 = vmatmul.mubr.f32.gmra.mrb[0].mxu0 %v155
      %v285 = vpop.f32.mrb[0].mxu0
      %v286 = vadd.f32 0.0, %v285
      %v287 = vpop.f32.mrb[0].mxu0
      %288 = vmatprep.mubr.f32.mxu0 0.0
      %289 = vmatmul.mubr.f32.gmra.mrb[0].mxu0 %v156
      %v290 = vpop.f32.mrb[0].mxu0
      %v291 = vadd.f32 0.0, %v290
      %v292 = vpop.f32.mrb[0].mxu0
      %293 = vmatprep.mubr.f32.mxu0 0.0
      %294 = vmatmul.mubr.f32.gmra.mrb[0].mxu0 %v157
      %v295 = vpop.f32.mrb[0].mxu0
      %v296 = vadd.f32 0.0, %v295
      %v297 = vpop.f32.mrb[0].mxu0
      %298 = vmatprep.mubr.f32.mxu0 0.0
      %299 = vmatmul.mubr.f32.gmra.mrb[0].mxu0 %v158
      %v300 = vpop.f32.mrb[0].mxu0
      %v301 = vadd.f32 0.0, %v300
      %v302 = vpop.f32.mrb[0].mxu0
      %303 = vmatprep.mubr.f32.mxu0 0.0
      %304 = vmatmul.mubr.f32.gmra.mrb[0].mxu0 %v159
      %v305 = vpop.f32.mrb[0].mxu0
      %v306 = vadd.f32 0.0, %v305
      %v307 = vpop.f32.mrb[0].mxu0
      %308 = vmatprep.mubr.f32.mxu0 0.0
      %309 = vmatmul.mubr.f32.gmra.mrb[0].mxu0 %v160
      %v310 = vpop.f32.mrb[0].mxu0
      %v311 = vadd.f32 0.0, %v310
      %v312 = vpop.f32.mrb[0].mxu0
      %313 = vmatprep.mubr.f32.mxu0 0.0
      %314 = vmatmul.mubr.f32.gmra.mrb[0].mxu0 %v161
      %v315 = vpop.f32.mrb[0].mxu0
      %v316 = vadd.f32 0.0, %v315
      %v317 = vpop.f32.mrb[0].mxu0
      %318 = vmatprep.mubr.f32.mxu0 0.0
      %319 = vmatmul.mubr.f32.gmra.mrb[0].mxu0 %v162
      %v320 = vpop.f32.mrb[0].mxu0
      %v321 = vadd.f32 0.0, %v320
      %v322 = vpop.f32.mrb[0].mxu0
      %323 = vdwg.mxu0
      %vm324 = vcmask 31744
      %325 = vst.msk [vmem:[%s145] sm:$0xff] %vm324, %v246
      %326 = vst.msk [vmem:[%s145 + $0x8] sm:$0xff] %vm324, %v251
      %327 = vst.msk [vmem:[%s145 + $0x10] sm:$0xff] %vm324, %v256
      %328 = vst.msk [vmem:[%s145 + $0x18] sm:$0xff] %vm324, %v261
      %329 = vst.msk [vmem:[%s145 + $0x20] sm:$0xff] %vm324, %v266
      %330 = vst.msk [vmem:[%s145 + $0x28] sm:$0xff] %vm324, %v271
      %331 = vst.msk [vmem:[%s145 + $0x30] sm:$0xff] %vm324, %v276
      %332 = vst.msk [vmem:[%s145 + $0x38] sm:$0xff] %vm324, %v281
      %333 = vst.msk [vmem:[%s145 + $0x40] sm:$0xff] %vm324, %v286
      %334 = vst.msk [vmem:[%s145 + $0x48] sm:$0xff] %vm324, %v291
      %335 = vst.msk [vmem:[%s145 + $0x50] sm:$0xff] %vm324, %v296
      %336 = vst.msk [vmem:[%s145 + $0x58] sm:$0xff] %vm324, %v301
      %337 = vst.msk [vmem:[%s145 + $0x60] sm:$0xff] %vm324, %v306
      %338 = vst.msk [vmem:[%s145 + $0x68] sm:$0xff] %vm324, %v311
      %339 = vst.msk [vmem:[%s145 + $0x70] sm:$0xff] %vm324, %v316
      %340 = vst.msk [vmem:[%s145 + $0x78] sm:$0xff] %vm324, %v321
      %s341 = smul.u32 16, %s13
      %p342 = scmp.lt.s32.totalorder %s341, 31
      %s343 = scalar_select %p342, %s341, 31
      %s344 = smul.addr %s343, 8
      %s345 = scalar_lea.vmem %s2, %s344
      // Predicated region
      $region29: #{cox_forward.1} parent=27 // pred_check
        %p346 = pneg %p78
      $region30: #{cox_forward.1} parent=27 // pred_check_branch
        %348 = sbr.rel (%p346) target = $region32
      $region31: #{cox_forward.1} parent=27 // pred_region
        %s349 = smul.u32 16, %s13
      $region32: #{cox_forward.1} parent=27 // pred_fallthru
        _
    $region28: #{cox_forward.1} parent=5 // pred_fallthru
      _
    %p350 = scmp.le.s32.totalorder 2, %s8
    // Predicated region
    $region33: #{cox_forward.1} parent=5 // pred_check
      %p351 = pneg %p350
    $region34: #{cox_forward.1} parent=5 // pred_check_branch
      %353 = sbr.rel (%p351) target = $region36
    $region35: #{cox_forward.1} parent=5 // pred_region
      %s354 = ssub.s32 %s8, 2
      // Predicated region
      $region37: #{cox_forward.1} parent=35 // pred_check
        %p355 = pneg %p84
      $region38: #{cox_forward.1} parent=35 // pred_check_branch
        %357 = sbr.rel (%p355) target = $region40
      $region39: #{cox_forward.1} parent=35 // pred_region
        %s358 = smul.u32 16, %s14
        %p359 = scmp.lt.s32.totalorder %s358, 31
        %s360 = scalar_select %p359, %s358, 31
        %s361 = smul.addr %s360, 8
        %s362 = scalar_lea.vmem %s2, %s361
      $region40: #{cox_forward.1} parent=35 // pred_fallthru
        _
    $region36: #{cox_forward.1} parent=5 // pred_fallthru
      _
  $region6: #{cox_forward.1} parent=0 // loop_footer
    %s12 = sadd.s32 1, %s8
  $region7: #{cox_forward.1} parent=0 // loop_footer_branch
    %7 = sbr.rel target = $region3
  $region8: #{cox_forward.1} parent=0 // loop_exit
    _

</llo_original>
